<compile_context>
chip_gen: v6e
topology: v6e:2x2x1
jax: 0.10.0
libtpu: 0.0.40
codegen_flags: <defaults>
</compile_context>

<pallas_src>
import functools

import jax
import jax.numpy as jnp
from jax.experimental import pallas as pl
from jax.experimental.pallas import tpu as pltpu

LANE = 128
SUBLANE = 8                        # f32 vreg sublanes
MAX_BLOCK_ROWS = 4096              # 4096x128 f32 block = 2 MiB
VMEM_LIMIT_BYTES = 32 * 1024 * 1024


def _tensorcores_per_chip():
    """Best-effort TensorCores-per-device count (for megacore grid splitting).

    Wrong guesses are still correct (the kernel masks the overhang iteration);
    they only cost a little performance, so default to 2 on unknown chips.
    """
    try:
        kind = jax.devices()[0].device_kind.lower()
    except Exception:
        return 2
    single_tc = ("v2", "v3", "v5 lite", "v5lite", "v5e", "v6 lite", "v6e")
    return 1 if any(s in kind for s in single_tc) else 2


def _focal_terms(p, pos, *, gamma, alpha0, alpha1, eps):
    """Per-element  alpha_t * (1 - pt)**gamma * log(pt)   (NOT yet negated).

    torch: pt = exp(log(pt_raw + eps)) == pt_raw + eps, so the exp is skipped.
    """
    p = p.astype(jnp.float32)                      # upcast in vregs (bf16 ok)
    pt = jnp.where(pos, p, 1.0 - p) + jnp.float32(eps)
    logpt = jnp.log(pt)                            # 1 EUP op / element
    if alpha0 != 1.0 or alpha1 != 1.0:
        logpt = logpt * jnp.where(pos, jnp.float32(alpha1), jnp.float32(alpha0))
    g = float(gamma)
    if g == 0.0:
        return logpt                               # 0**0 == 1 handled correctly
    gi = int(g)
    if float(gi) == g and 1 <= gi <= 8:
        # Integer gamma: repeated multiplies, no clamp (matches torch; 1-pt can
        # only go negative by <= eps, contributing O(eps**gamma)).
        omt = 1.0 - pt
        w = omt
        for _ in range(gi - 1):
            w = w * omt
    else:
        omt = jnp.maximum(1.0 - pt, 0.0)           # clamp only for exp/log path
        w = jnp.exp(jnp.float32(g) * jnp.log(omt))
    return w * logpt


def _focal_loss_kernel(p_ref, t_ref, out_ref, *, gamma, alpha0, alpha1, eps,
                       bpg, nblocks, valid_rows_in_last, need_mask,
                       skip_overhang):
    """One grid step: accumulate per-(sublane,lane) partial sums of the terms.

    p_ref:   (block_rows, 128) float  probabilities of class 1 (f32 or bf16)
    t_ref:   (block_rows, 128) int    targets in {0, 1}
    out_ref: (8, 128)          f32    running partial sums for this group
    """
    # Init this group's accumulator on its first reduction step.
    @pl.when(pl.program_id(1) == 0)
    def _():
        out_ref[...] = jnp.zeros_like(out_ref)

    block_id = pl.program_id(0) * bpg + pl.program_id(1)

    vals = _focal_terms(p_ref[...], t_ref[...] != 0,
                        gamma=gamma, alpha0=alpha0, alpha1=alpha1, eps=eps)

    def _accumulate(v):
        # (block_rows,128) -> (block_rows//8, 8, 128); the sum over the leading
        # axis is plain vreg adds (VPU).  The cross-lane (XLU) reduce happens
        # exactly once, outside the kernel.
        out_ref[...] += v.reshape(-1, SUBLANE, LANE).sum(axis=0)

    if need_mask:
        # Only the last *logical* block is partial: rows beyond
        # valid_rows_in_last are out-of-bounds/garbage and must not contribute.
        is_last = block_id == nblocks - 1

        @pl.when(is_last)
        def _():
            ridx = jax.lax.broadcasted_iota(jnp.int32, vals.shape, 0)
            _accumulate(jnp.where(ridx < valid_rows_in_last, vals, 0.0))

        not_last = jnp.logical_not(is_last)
        if skip_overhang:
            # Odd nblocks on a 2-group split: the clamped index_map re-reads the
            # last block on the overhang iteration; never accumulate it.
            not_last = jnp.logical_and(not_last, block_id < nblocks)

        @pl.when(not_last)
        def _():
            _accumulate(vals)
    else:
        if skip_overhang:
            @pl.when(block_id < nblocks)
            def _():
                _accumulate(vals)
        else:
            _accumulate(vals)


def focal_loss(outputs, targets, *, gamma=0.0, alpha=None, size_average=True,
               eps=1e-10, _force_ngroups=None):
    """Pallas implementation of FocalLoss.forward.

    outputs: float probabilities of the positive class (any shape; flattened).
    targets: int labels in {0, 1} (same number of elements).
    Returns a scalar f32 loss (mean if size_average else sum).
    """
    n = int(outputs.size)

    # Resolve alpha the same way the torch __init__ does (static / trace-time).
    if isinstance(alpha, (float, int)) and not isinstance(alpha, bool):
        alpha0, alpha1 = 1.0 - float(alpha), float(alpha)
    elif isinstance(alpha, (list, tuple)):
        alpha0, alpha1 = float(alpha[0]), float(alpha[1])
    else:  # alpha is None -> no class weighting
        alpha0 = alpha1 = 1.0

    # Native dtypes all the way to the kernel: no wrapper-side converts.
    p_flat = outputs.reshape(-1)
    t_flat = targets.reshape(-1)

    # Sub-32-bit dtypes pack along sublanes -> keep block rows 32-aligned then.
    align = SUBLANE
    if p_flat.dtype.itemsize < 4 or t_flat.dtype.itemsize < 4:
        align = 32

    rows = n // LANE
    n_main = rows * LANE if rows >= align else 0  # tiny inputs: all-jnp path

    partial_total = jnp.float32(0.0)
    if n_main > 0:
        if n_main == n:
            p2 = p_flat.reshape(rows, LANE)       # free bitcast reshape
            t2 = t_flat.reshape(rows, LANE)
        else:
            # TODO(synk): the prefix slice materializes one copy of the main
            # part for N not a multiple of 128; only the <128-element tail is
            # otherwise touched outside the kernel.
            p2 = jax.lax.slice(p_flat, (0,), (n_main,)).reshape(rows, LANE)
            t2 = jax.lax.slice(t_flat, (0,), (n_main,)).reshape(rows, LANE)

        block_rows = min(MAX_BLOCK_ROWS, (rows // align) * align)
        nblocks = pl.cdiv(rows, block_rows)

        n_tc = _force_ngroups if _force_ngroups is not None else _tensorcores_per_chip()
        ngroups = 2 if (n_tc >= 2 and nblocks >= 2) else 1
        bpg = pl.cdiv(nblocks, ngroups)
        skip_overhang = ngroups * bpg > nblocks        # odd nblocks on 2 groups

        need_mask = nblocks * block_rows > rows        # partial last block
        valid_rows_in_last = rows - (nblocks - 1) * block_rows

        if skip_overhang:
            last_block = nblocks - 1
            row_map = lambda g, i: (jnp.minimum(g * bpg + i, last_block), 0)
        else:
            row_map = lambda g, i: (g * bpg + i, 0)

        kernel = functools.partial(
            _focal_loss_kernel,
            gamma=float(gamma), alpha0=float(alpha0), alpha1=float(alpha1),
            eps=float(eps), bpg=int(bpg), nblocks=int(nblocks),
            valid_rows_in_last=int(valid_rows_in_last),
            need_mask=bool(need_mask), skip_overhang=bool(skip_overhang))

        gamma_is_small_int = (float(int(gamma)) == float(gamma)
                              and 0 <= int(gamma) <= 8)
        cost = pl.CostEstimate(
            flops=10 * n_main,
            transcendentals=(1 if gamma_is_small_int else 3) * n_main,
            bytes_accessed=(p2.dtype.itemsize + t2.dtype.itemsize) * n_main
                           + 4 * ngroups * SUBLANE * LANE)

        partials = pl.pallas_call(
            kernel,
            out_shape=jax.ShapeDtypeStruct((ngroups, SUBLANE, LANE), jnp.float32),
            grid_spec=pltpu.PrefetchScalarGridSpec(
                num_scalar_prefetch=0,
                grid=(ngroups, bpg),
                in_specs=[
                    pl.BlockSpec((block_rows, LANE), row_map),
                    pl.BlockSpec((block_rows, LANE), row_map),
                ],
                out_specs=pl.BlockSpec((None, SUBLANE, LANE),
                                       lambda g, i: (g, 0, 0)),
            ),
            compiler_params=pltpu.CompilerParams(
                dimension_semantics=("parallel", "arbitrary"),
                vmem_limit_bytes=VMEM_LIMIT_BYTES),
            cost_estimate=cost,
        )(p2, t2)
        partial_total = jnp.sum(partials)   # single tiny cross-lane reduce (XLA)

    if n_main < n:
        # Ragged tail (< 128 elements, or the whole thing for tiny inputs):
        # a few lines of plain jnp added to the partial sums.
        p_tail = jax.lax.slice(p_flat, (n_main,), (n,))
        t_tail = jax.lax.slice(t_flat, (n_main,), (n,))
        tail_terms = _focal_terms(p_tail, t_tail != 0, gamma=gamma,
                                  alpha0=alpha0, alpha1=alpha1, eps=eps)
        partial_total = partial_total + jnp.sum(tail_terms)

    total = -partial_total                  # negation folded out of the kernel
    if size_average:
        total = total / jnp.float32(n)
    return total


def focal_loss_ref(outputs, targets, *, gamma=0.0, alpha=None,
                   size_average=True, eps=1e-10):
    """Pure-JAX reference mirroring the torch forward exactly."""
    outputs = outputs.reshape(-1).astype(jnp.float32)
    tgt = targets.reshape(-1).astype(jnp.int32)
    stacked = jnp.stack([1.0 - outputs, outputs], axis=1)           # (N, 2)
    logpt = jnp.log(stacked + eps)
    logpt = jnp.take_along_axis(logpt, tgt.reshape(-1, 1), axis=1).reshape(-1)
    pt = jnp.exp(logpt)
    if alpha is not None:
        if isinstance(alpha, (float, int)):
            a = jnp.array([1.0 - alpha, alpha], jnp.float32)
        else:
            a = jnp.array(alpha, jnp.float32)
        logpt = logpt * a[tgt]
    loss = -1.0 * (1.0 - pt) ** gamma * logpt
    return loss.mean() if size_average else loss.sum()


if __name__ == "__main__":
    key = jax.random.PRNGKey(0)
    keys = jax.random.split(key, 4)

    def make(n, k, dtype=jnp.float32):
        kp, kt = jax.random.split(k)
        probs = jax.random.uniform(kp, (n,), jnp.float32, 0.01, 0.99).astype(dtype)
        tgts = jax.random.bernoulli(kt, 0.3, (n,)).astype(jnp.int32)
        return probs, tgts

    def check(out, ref, rtol=5e-4, atol=1e-6):
        out = jax.block_until_ready(out)
        assert jnp.allclose(out, ref, rtol=rtol, atol=atol), (out, ref)

    # Case 1: small prediction map (4 x 16 x 16 = 1024 elems, single exact block).
    p1, t1 = make(4 * 16 * 16, keys[0])
    p1m, t1m = p1.reshape(4, 16, 16), t1.reshape(4, 16, 16)
    check(focal_loss(p1m, t1m, gamma=2.0, alpha=0.25, size_average=True),
          focal_loss_ref(p1m, t1m, gamma=2.0, alpha=0.25, size_average=True))

    # Case 2: gamma=0 / alpha=None / sum path (exercises the specializations).
    check(focal_loss(p1m, t1m, gamma=0.0, alpha=None, size_average=False),
          focal_loss_ref(p1m, t1m, gamma=0.0, alpha=None, size_average=False))

    # Case 3: large ragged input (multi-block grid, odd block count, masked
    # partial last block, <128-element jnp tail), list alpha.
    p3, t3 = make(12188 * 128 + 72, keys[1])
    check(focal_loss(p3, t3, gamma=2.0, alpha=[0.3, 0.7], size_average=True),
          focal_loss_ref(p3, t3, gamma=2.0, alpha=[0.3, 0.7], size_average=True))

    # Case 4: force the 2-group (megacore-style) split with an odd block count
    # to exercise the clamped index_map + overhang skip on any chip.
    check(focal_loss(p3, t3, gamma=2.0, alpha=0.25, size_average=True,
                     _force_ngroups=2),
          focal_loss_ref(p3, t3, gamma=2.0, alpha=0.25, size_average=True))

    # Case 5: bf16 probabilities (in-kernel upcast) + non-integer gamma.
    p5, t5 = make(8192, keys[2], dtype=jnp.bfloat16)
    check(focal_loss(p5, t5, gamma=1.5, alpha=None, size_average=True),
          focal_loss_ref(p5, t5, gamma=1.5, alpha=None, size_average=True))

    print("KERNEL_OK")
</pallas_src>

<mosaic_0001>
module attributes {stable_mosaic.version = 11 : i64} {
  func.func @_focal_loss_kernel(%arg0: i32, %arg1: i32, %arg2: memref<8x128xf32, #tpu.memory_space<vmem>>, %arg3: memref<8x128xi32, #tpu.memory_space<vmem>>, %arg4: memref<1x8x128xf32, #tpu.memory_space<vmem>>) attributes {dimension_semantics = [#tpu.dimension_semantics<parallel>, #tpu.dimension_semantics<arbitrary>], iteration_bounds = array<i64: 1, 1>, scalar_prefetch = 0 : i64, scratch_operands = 0 : i64, tpu.core_type = #tpu.core_type<tc>, window_params = [{transform_indices = @transform_0, window_bounds = array<i64: 8, 128>}, {transform_indices = @transform_1, window_bounds = array<i64: 8, 128>}, {transform_indices = @transform_2, window_bounds = array<i64: 1, 8, 128>}]} {
    %c0_i32 = arith.constant 0 : i32
    %0 = arith.cmpi eq, %arg1, %c0_i32 : i32
    %1 = arith.extui %0 : i1 to i32
    %c0_i32_0 = arith.constant 0 : i32
    %2 = arith.cmpi ne, %1, %c0_i32_0 : i32
    scf.if %2 {
      %cst_16 = arith.constant 0.000000e+00 : f32
      %29 = vector.broadcast %cst_16 : f32 to vector<8x128xf32>
      %c0_17 = arith.constant 0 : index
      %c0_18 = arith.constant 0 : index
      %c0_19 = arith.constant 0 : index
      %30 = vector.load %arg4[%c0_17, %c0_18, %c0_19] : memref<1x8x128xf32, #tpu.memory_space<vmem>>, vector<1x8x128xf32>
      %31 = vector.shape_cast %30 : vector<1x8x128xf32> to vector<8x128xf32>
      %32 = vector.shape_cast %29 : vector<8x128xf32> to vector<1x8x128xf32>
      tpu.vector_store %arg4[%c0_17, %c0_18, %c0_19], %32 {strides = array<i32>} : memref<1x8x128xf32, #tpu.memory_space<vmem>>, vector<1x8x128xf32>,
    } else {
    }
    %c0 = arith.constant 0 : index
    %c0_1 = arith.constant 0 : index
    %3 = vector.load %arg2[%c0, %c0_1] : memref<8x128xf32, #tpu.memory_space<vmem>>, vector<8x128xf32>
    %c0_2 = arith.constant 0 : index
    %c0_3 = arith.constant 0 : index
    %4 = vector.load %arg3[%c0_2, %c0_3] : memref<8x128xi32, #tpu.memory_space<vmem>>, vector<8x128xi32>
    %c0_i32_4 = arith.constant 0 : i32
    %5 = vector.broadcast %c0_i32_4 : i32 to vector<8x128xi32>
    %6 = arith.cmpi ne, %4, %5 : vector<8x128xi32>
    %cst = arith.constant 1.000000e+00 : f32
    %7 = vector.broadcast %cst : f32 to vector<8x128xf32>
    %8 = arith.subf %7, %3 : vector<8x128xf32>
    %9 = arith.select %6, %3, %8 : vector<8x128xi1>, vector<8x128xf32>
    %cst_5 = arith.constant 1.000000e-10 : f32
    %10 = vector.broadcast %cst_5 : f32 to vector<8x128xf32>
    %11 = arith.addf %9, %10 : vector<8x128xf32>
    %12 = math.log %11 : vector<8x128xf32>
    %cst_6 = arith.constant 2.500000e-01 : f32
    %cst_7 = arith.constant 7.500000e-01 : f32
    %13 = vector.broadcast %cst_6 : f32 to vector<8x128xf32>
    %14 = vector.broadcast %cst_7 : f32 to vector<8x128xf32>
    %15 = arith.select %6, %13, %14 : vector<8x128xi1>, vector<8x128xf32>
    %16 = arith.mulf %12, %15 : vector<8x128xf32>
    %cst_8 = arith.constant 1.000000e+00 : f32
    %17 = vector.broadcast %cst_8 : f32 to vector<8x128xf32>
    %18 = arith.subf %17, %11 : vector<8x128xf32>
    %19 = arith.mulf %18, %18 : vector<8x128xf32>
    %20 = arith.mulf %19, %16 : vector<8x128xf32>
    %c0_9 = arith.constant 0 : index
    %c0_10 = arith.constant 0 : index
    %c0_11 = arith.constant 0 : index
    %21 = vector.load %arg4[%c0_9, %c0_10, %c0_11] : memref<1x8x128xf32, #tpu.memory_space<vmem>>, vector<1x8x128xf32>
    %22 = vector.shape_cast %21 : vector<1x8x128xf32> to vector<8x128xf32>
    %23 = vector.shape_cast %20 : vector<8x128xf32> to vector<1x8x128xf32>
    %cst_12 = arith.constant dense<0.000000e+00> : vector<8x128xf32>
    %24 = vector.multi_reduction <add>, %23, %cst_12 [0] : vector<1x8x128xf32> to vector<8x128xf32>
    %25 = arith.addf %22, %24 : vector<8x128xf32>
    %c0_13 = arith.constant 0 : index
    %c0_14 = arith.constant 0 : index
    %c0_15 = arith.constant 0 : index
    %26 = vector.load %arg4[%c0_13, %c0_14, %c0_15] : memref<1x8x128xf32, #tpu.memory_space<vmem>>, vector<1x8x128xf32>
    %27 = vector.shape_cast %26 : vector<1x8x128xf32> to vector<8x128xf32>
    %28 = vector.shape_cast %25 : vector<8x128xf32> to vector<1x8x128xf32>
    tpu.vector_store %arg4[%c0_13, %c0_14, %c0_15], %28 {strides = array<i32>} : memref<1x8x128xf32, #tpu.memory_space<vmem>>, vector<1x8x128xf32>,
    return
  }
  func.func @transform_0(%arg0: i32, %arg1: i32) -> (i32, i32) {
    %c1_i32 = arith.constant 1 : i32
    %0 = arith.muli %arg0, %c1_i32 : i32
    %1 = arith.addi %0, %arg1 : i32
    %c0_i32 = arith.constant 0 : i32
    %c0_i32_0 = arith.constant 0 : i32
    return %1, %c0_i32 : i32, i32
  }
  func.func @transform_1(%arg0: i32, %arg1: i32) -> (i32, i32) {
    %c1_i32 = arith.constant 1 : i32
    %0 = arith.muli %arg0, %c1_i32 : i32
    %1 = arith.addi %0, %arg1 : i32
    %c0_i32 = arith.constant 0 : i32
    %c0_i32_0 = arith.constant 0 : i32
    return %1, %c0_i32 : i32, i32
  }
  func.func @transform_2(%arg0: i32, %arg1: i32) -> (i32, i32, i32) {
    %c0_i32 = arith.constant 0 : i32
    %c0_i32_0 = arith.constant 0 : i32
    %c0_i32_1 = arith.constant 0 : i32
    return %arg0, %c0_i32, %c0_i32_0 : i32, i32, i32
  }
}

</mosaic_0001>

<llo_original>
// kernel: tpu_custom_call.1
$region0: #{tpu_custom_call.1}
  #allocation0 [shape = 'u32[]', space=smem, size = 0x4, offset = 0x4, fixed_abs, tag = 'smem constant byte address 0x4 - core index']
  #allocation1 [shape = 'u32[144,128]{1,0:T(1,128)}', space=vmem, size = 0x12000, scoped, tag = 'internal scratch']
  %s0 = inlined_call_operand.hbm [shape: f32[8,128], index: 0, kind: input, shape index: {}]
  %s1 = inlined_call_operand.hbm [shape: s32[8,128], index: 1, kind: input, shape index: {}]
  %s2 = inlined_call_operand.hbm [shape: f32[1,8,128], index: 2, kind: output, shape index: {}]
  %s3 = sld [smem:[#allocation0]]
  $region30: #{tpu_custom_call.1} parent=0
    _
  %s5 = ssub.s32 1, %s3
  %s6 = scalar_select 0, %s5, %s3
  $region1: #{tpu_custom_call.1} parent=0
    #allocation2 [shape = 'u8[4096]{0}', space=vmem, size = 0x1000, scoped, tag = 'input window, operand 0, single buffered']
    #allocation3 [shape = 's32[1]{0}', space=sflag, size = 0x4, scoped, tag = 'scoped memory for tpu_custom_call.1']
    #allocation4 [shape = 's32[1]{0}', space=sflag, size = 0x4, scoped, tag = 'scoped memory for tpu_custom_call.1']
    #allocation5 [shape = 'u8[4096]{0}', space=vmem, size = 0x1000, scoped, tag = 'input window, operand 1, single buffered']
    #allocation6 [shape = 's32[1]{0}', space=sflag, size = 0x4, scoped, tag = 'scoped memory for tpu_custom_call.1']
    #allocation7 [shape = 'u8[4096]{0}', space=vmem, size = 0x1000, scoped, tag = 'output window, operand 0, single buffered']
    %7 = vsyncpa [#allocation3], 0
    %8 = vsyncpa [#allocation6], 0
    %9 = vsyncpa [#allocation4], 0
    // Predicated region
    $region2: #{tpu_custom_call.1} parent=1 // pred_check
      _
    $region3: #{tpu_custom_call.1} parent=1 // pred_check_branch
      %11 = sbr.rel (0) target = $region5
    $region4: #{tpu_custom_call.1} parent=1 // pred_region
      %s12 = sadd.s32 0, 0
      %s14 = ssub.s32 128, 128
      %15 = vsyncadd [#allocation3], %s14
      %s16 = smul.addr %s12, 128
      %s17 = scalar_lea.hbm %s0, %s16
      %s19 = sshll.u32 [#allocation2], 4
      %s20 = int_to_ptr.vmem [resolvable:$true] %s19
      %22 = dma.hbm_to_vmem [thread:$0]  %s17, 128, %s20, [#allocation3]
    $region5: #{tpu_custom_call.1} parent=1 // pred_fallthru
      _
    // Predicated region
    $region6: #{tpu_custom_call.1} parent=1 // pred_check
      _
    $region7: #{tpu_custom_call.1} parent=1 // pred_check_branch
      %24 = sbr.rel (0) target = $region9
    $region8: #{tpu_custom_call.1} parent=1 // pred_region
      %s25 = sadd.s32 0, 0
      %s27 = ssub.s32 128, 128
      %28 = vsyncadd [#allocation6], %s27
      %s29 = smul.addr %s25, 128
      %s30 = scalar_lea.hbm %s1, %s29
      %s32 = sshll.u32 [#allocation5], 4
      %s33 = int_to_ptr.vmem [resolvable:$true] %s32
      %35 = dma.hbm_to_vmem [thread:$0]  %s30, 128, %s33, [#allocation6]
    $region9: #{tpu_custom_call.1} parent=1 // pred_fallthru
      _
    // Predicated region
    $region10: #{tpu_custom_call.1} parent=1 // pred_check
      _
    $region11: #{tpu_custom_call.1} parent=1 // pred_check_branch
      %37 = sbr.rel (0) target = $region13
    $region12: #{tpu_custom_call.1} parent=1 // pred_region
      %38 = dma.done [#allocation3], 128
    $region13: #{tpu_custom_call.1} parent=1 // pred_fallthru
      _
    // Predicated region
    $region14: #{tpu_custom_call.1} parent=1 // pred_check
      _
    $region15: #{tpu_custom_call.1} parent=1 // pred_check_branch
      %40 = sbr.rel (0) target = $region17
    $region16: #{tpu_custom_call.1} parent=1 // pred_region
      %41 = dma.done [#allocation6], 128
    $region17: #{tpu_custom_call.1} parent=1 // pred_fallthru
      _
    %s42 = sadd.s32 0, 0
    %s43 = sadd.s32 0, 0
    %p44 = scmp.eq.s32.totalorder 0, 0
    // Predicated region
    $region18: #{tpu_custom_call.1} parent=1 // pred_check
      %p45 = pneg %p44
    $region19: #{tpu_custom_call.1} parent=1 // pred_check_branch
      %47 = sbr.rel (%p45) target = $region21
    $region20: #{tpu_custom_call.1} parent=1 // pred_region
      %48 = vst [vmem:[#allocation7] sm:$0xff] 0.0
    $region21: #{tpu_custom_call.1} parent=1 // pred_fallthru
      _
    %v49 = vld [vmem:[#allocation2] sm:$0xff]
    %v50 = vld [vmem:[#allocation5] sm:$0xff]
    %vm51 = vcmp.ne.s32.totalorder %v50, 0
    %v52 = vsub.f32 1.0, %v49
    %v53 = vsel %vm51, %v49, %v52
    %v54 = vadd.f32 %v53, 1e-10
    %v55 = vlog2.pop %v54
    %v56 = vmul.f32 %v55, 0.6931472
    %v57 = vsel %vm51, 0.25, 0.75
    %v58 = vmul.f32 %v56, %v57
    %v59 = vsub.f32 1.0, %v54
    %v60 = vmul.f32 %v59, %v59
    %v61 = vmul.f32 %v60, %v58
    %v62 = vld [vmem:[#allocation7] sm:$0xff]
    %v63 = vadd.f32 %v61, 0.0
    %v64 = vadd.f32 %v62, %v63
    %65 = vst [vmem:[#allocation7] sm:$0xff] %v64
    // Predicated region
    $region22: #{tpu_custom_call.1} parent=1 // pred_check
      _
    $region23: #{tpu_custom_call.1} parent=1 // pred_check_branch
      %67 = sbr.rel (0) target = $region25
    $region24: #{tpu_custom_call.1} parent=1 // pred_region
      %s69 = ssub.s32 128, 128
      %70 = vsyncadd [#allocation4], %s69
      %s72 = sshll.u32 [#allocation7], 4
      %s73 = int_to_ptr.vmem [resolvable:$true] %s72
      %75 = dma.vmem_to_hbm [thread:$0]  %s73, 128, %s2, [#allocation4]
    $region25: #{tpu_custom_call.1} parent=1 // pred_fallthru
      _
    // Predicated region
    $region26: #{tpu_custom_call.1} parent=1 // pred_check
      _
    $region27: #{tpu_custom_call.1} parent=1 // pred_check_branch
      %77 = sbr.rel (0) target = $region29
    $region28: #{tpu_custom_call.1} parent=1 // pred_region
      %78 = dma.done [#allocation4], 128
    $region29: #{tpu_custom_call.1} parent=1 // pred_fallthru
      _
    %79 = vsyncpa [#allocation3], 1
    %80 = vsyncpa [#allocation6], 1
    %81 = vsyncpa [#allocation4], 1

</llo_original>
